<compile_context>
chip_gen: v5e
topology: v5e:2x2
jax: 0.10.0
libtpu: 0.0.40
codegen_flags: <defaults>
</compile_context>

<pallas_src>
import jax
import jax.numpy as jnp
from jax.experimental import pallas as pl
from jax.experimental.pallas import tpu as pltpu


def _fusion_kernel(s_ref, f_ref, o_ref):
    # s_ref : (L, ct_blk)         softmax scores expanded over T, features dtype
    # f_ref : (L, b_blk, ct_blk)  feature tile in its native dtype
    # o_ref : (b_blk, ct_blk)     fused output tile
    num_levels = f_ref.shape[0]
    # Multiply in the input dtype, widen into an f32 accumulator. Unrolled over
    # L (small) so no (L, ...) intermediate is ever materialized.
    acc = (f_ref[0] * s_ref[pl.ds(0, 1), :]).astype(jnp.float32)
    for l in range(1, num_levels):
        acc += (f_ref[l] * s_ref[pl.ds(l, 1), :]).astype(jnp.float32)
    o_ref[...] = acc.astype(o_ref.dtype)


def _vmem_capacity_bytes():
    try:
        return int(pltpu.get_tpu_info().vmem_capacity_bytes)
    except Exception:
        return 64 << 20  # conservative (v7x per-TC size); safe everywhere


def attention_fusion(features, attention_weights, *, b_blk=None, ct_blk=None):
    """features: (L, B, C, T), attention_weights: (L, C) -> (B, C, T)."""
    L, B, C, T = features.shape
    assert attention_weights.shape == (L, C)
    CT = C * T
    itemsize = jnp.dtype(features.dtype).itemsize

    # Hoisted softmax (batch-invariant), expanded over T so the in-kernel scale
    # is purely per-lane on the folded CT axis. Stored in the features dtype to
    # keep the score side-stream as small as possible.
    scores = jax.nn.softmax(attention_weights.astype(jnp.float32), axis=0)       # (L, C)
    scores_flat = (
        jnp.broadcast_to(scores[:, :, None], (L, C, T))
        .reshape(L, CT)
        .astype(features.dtype)
    )
    feats_flat = features.reshape(L, B, CT)                                       # (L, B, CT)

    # ---- tile selection --------------------------------------------------
    # Feature-block byte target derived from this chip's VMEM: ~cap/5 so that
    # 2x feature + 2x output + scores double buffers fit with headroom.
    vmem_cap = _vmem_capacity_bytes()
    target_bytes = min(max(vmem_cap // 5, 4 << 20), 16 << 20)

    # Dtype-aware sublane floor: sub-32-bit dtypes pack rows along sublanes.
    b_floor = {4: 8, 2: 16, 1: 32}.get(itemsize, 8)

    # Lane (last) dim: prefer the full CT extent (contiguous HBM rows -> best
    # DMA) when even the minimum batch group fits the byte target; otherwise a
    # lane-dense 512 tile (multiple of 128 -> unmasked stores).
    if ct_blk is None:
        if CT <= 512 or b_floor * L * CT * itemsize <= target_bytes:
            ct_blk = CT
        else:
            ct_blk = 512

    # Batch (sublane) dim: group rows up to the byte target; full-extent B is
    # always legal, otherwise a multiple of the dtype-aware floor.
    if b_blk is None:
        max_b = max(1, target_bytes // max(L * ct_blk * itemsize, 1))
        if B <= max_b:
            b_blk = B
        else:
            b_blk = b_floor
            while b_blk * 2 <= max_b:
                b_blk *= 2

    # cdiv grid, CT outer / batch inner so the scores tile stays resident
    # across the inner batch loop (no per-step re-DMA).
    grid = (pl.cdiv(CT, ct_blk), pl.cdiv(B, b_blk))

    # Raise the scoped VMEM limit to cover double-buffered blocks (+ headroom),
    # never above physical capacity.
    feat_blk_bytes = L * b_blk * ct_blk * itemsize
    out_blk_bytes = b_blk * ct_blk * itemsize
    scr_blk_bytes = L * ct_blk * itemsize
    budget = 2 * (feat_blk_bytes + out_blk_bytes + scr_blk_bytes) + (4 << 20)
    vmem_limit = min(vmem_cap, max(budget, 32 << 20))

    out_flat = pl.pallas_call(
        _fusion_kernel,
        out_shape=jax.ShapeDtypeStruct((B, CT), features.dtype),
        grid_spec=pltpu.PrefetchScalarGridSpec(
            num_scalar_prefetch=0,
            grid=grid,
            in_specs=[
                pl.BlockSpec((L, ct_blk), lambda j, b: (0, j)),
                pl.BlockSpec((L, b_blk, ct_blk), lambda j, b: (0, b, j)),
            ],
            out_specs=pl.BlockSpec((b_blk, ct_blk), lambda j, b: (b, j)),
        ),
        compiler_params=pltpu.CompilerParams(
            dimension_semantics=("parallel", "parallel"),
            vmem_limit_bytes=int(vmem_limit),
        ),
    )(scores_flat, feats_flat)

    return out_flat.reshape(B, C, T)


def attention_fusion_ref(features, attention_weights):
    s = jax.nn.softmax(attention_weights, axis=0)[:, None, :, None]
    return jnp.sum(features * s, axis=0)


if __name__ == "__main__":
    key = jax.random.PRNGKey(0)
    k_w, k_f = jax.random.split(key)

    num_levels = 4      # L
    channel_size = 16   # C
    batch = 2           # B
    time = 16           # T

    # Deterministic "parameter" init (stands in for nn.Parameter(torch.randn(...))).
    attention_weights = jax.random.normal(k_w, (num_levels, channel_size), dtype=jnp.float32)
    features = jax.random.normal(
        k_f, (num_levels, batch, channel_size, time), dtype=jnp.float32)

    out = attention_fusion(features, attention_weights)
    out = jax.block_until_ready(out)

    ref = attention_fusion_ref(features, attention_weights)
    assert out.shape == (batch, channel_size, time)
    assert jnp.allclose(out, ref, atol=1e-5, rtol=1e-5), "mismatch vs reference"

    print("KERNEL_OK")
</pallas_src>

<mosaic_0001>
module attributes {stable_mosaic.version = 11 : i64} {
  func.func @_fusion_kernel(%arg0: i32, %arg1: i32, %arg2: memref<4x256xf32, #tpu.memory_space<vmem>>, %arg3: memref<4x2x256xf32, #tpu.memory_space<vmem>>, %arg4: memref<2x256xf32, #tpu.memory_space<vmem>>) attributes {dimension_semantics = [#tpu.dimension_semantics<parallel>, #tpu.dimension_semantics<parallel>], iteration_bounds = array<i64: 1, 1>, scalar_prefetch = 0 : i64, scratch_operands = 0 : i64, tpu.core_type = #tpu.core_type<tc>, window_params = [{transform_indices = @transform_0, window_bounds = array<i64: 4, 256>}, {transform_indices = @transform_1, window_bounds = array<i64: 4, 2, 256>}, {transform_indices = @transform_2, window_bounds = array<i64: 2, 256>}]} {
    %c0 = arith.constant 0 : index
    %c0_0 = arith.constant 0 : index
    %c0_1 = arith.constant 0 : index
    %0 = vector.load %arg3[%c0, %c0_0, %c0_1] : memref<4x2x256xf32, #tpu.memory_space<vmem>>, vector<1x2x256xf32>
    %1 = vector.shape_cast %0 : vector<1x2x256xf32> to vector<2x256xf32>
    %c0_2 = arith.constant 0 : index
    %c0_3 = arith.constant 0 : index
    %2 = vector.load %arg2[%c0_2, %c0_3] : memref<4x256xf32, #tpu.memory_space<vmem>>, vector<1x256xf32>
    %3 = vector.broadcast %2 : vector<1x256xf32> to vector<2x256xf32>
    %4 = arith.mulf %1, %3 : vector<2x256xf32>
    %c1 = arith.constant 1 : index
    %c0_4 = arith.constant 0 : index
    %c0_5 = arith.constant 0 : index
    %5 = vector.load %arg3[%c1, %c0_4, %c0_5] : memref<4x2x256xf32, #tpu.memory_space<vmem>>, vector<1x2x256xf32>
    %6 = vector.shape_cast %5 : vector<1x2x256xf32> to vector<2x256xf32>
    %c1_6 = arith.constant 1 : index
    %c0_7 = arith.constant 0 : index
    %7 = vector.load %arg2[%c1_6, %c0_7] : memref<4x256xf32, #tpu.memory_space<vmem>>, vector<1x256xf32>
    %8 = vector.broadcast %7 : vector<1x256xf32> to vector<2x256xf32>
    %9 = arith.mulf %6, %8 : vector<2x256xf32>
    %10 = arith.addf %4, %9 : vector<2x256xf32>
    %c2 = arith.constant 2 : index
    %c0_8 = arith.constant 0 : index
    %c0_9 = arith.constant 0 : index
    %11 = vector.load %arg3[%c2, %c0_8, %c0_9] : memref<4x2x256xf32, #tpu.memory_space<vmem>>, vector<1x2x256xf32>
    %12 = vector.shape_cast %11 : vector<1x2x256xf32> to vector<2x256xf32>
    %c2_10 = arith.constant 2 : index
    %c0_11 = arith.constant 0 : index
    %13 = vector.load %arg2[%c2_10, %c0_11] : memref<4x256xf32, #tpu.memory_space<vmem>>, vector<1x256xf32>
    %14 = vector.broadcast %13 : vector<1x256xf32> to vector<2x256xf32>
    %15 = arith.mulf %12, %14 : vector<2x256xf32>
    %16 = arith.addf %10, %15 : vector<2x256xf32>
    %c3 = arith.constant 3 : index
    %c0_12 = arith.constant 0 : index
    %c0_13 = arith.constant 0 : index
    %17 = vector.load %arg3[%c3, %c0_12, %c0_13] : memref<4x2x256xf32, #tpu.memory_space<vmem>>, vector<1x2x256xf32>
    %18 = vector.shape_cast %17 : vector<1x2x256xf32> to vector<2x256xf32>
    %c3_14 = arith.constant 3 : index
    %c0_15 = arith.constant 0 : index
    %19 = vector.load %arg2[%c3_14, %c0_15] : memref<4x256xf32, #tpu.memory_space<vmem>>, vector<1x256xf32>
    %20 = vector.broadcast %19 : vector<1x256xf32> to vector<2x256xf32>
    %21 = arith.mulf %18, %20 : vector<2x256xf32>
    %22 = arith.addf %16, %21 : vector<2x256xf32>
    %c0_16 = arith.constant 0 : index
    %c0_17 = arith.constant 0 : index
    %23 = vector.load %arg4[%c0_16, %c0_17] : memref<2x256xf32, #tpu.memory_space<vmem>>, vector<2x256xf32>
    tpu.vector_store %arg4[%c0_16, %c0_17], %22 {strides = array<i32>} : memref<2x256xf32, #tpu.memory_space<vmem>>, vector<2x256xf32>,
    return
  }
  func.func @transform_0(%arg0: i32, %arg1: i32) -> (i32, i32) {
    %c0_i32 = arith.constant 0 : i32
    %c0_i32_0 = arith.constant 0 : i32
    return %c0_i32, %arg0 : i32, i32
  }
  func.func @transform_1(%arg0: i32, %arg1: i32) -> (i32, i32, i32) {
    %c0_i32 = arith.constant 0 : i32
    %c0_i32_0 = arith.constant 0 : i32
    return %c0_i32, %arg1, %arg0 : i32, i32, i32
  }
  func.func @transform_2(%arg0: i32, %arg1: i32) -> (i32, i32) {
    %c0_i32 = arith.constant 0 : i32
    return %arg1, %arg0 : i32, i32
  }
}

</mosaic_0001>

<llo_original>
// kernel: tpu_custom_call.1
$region0: #{tpu_custom_call.1}
  #allocation0 [shape = 'u32[]', space=smem, size = 0x4, offset = 0x4, fixed_abs, tag = 'smem constant byte address 0x4 - core index']
  #allocation1 [shape = 'u32[72,128]{1,0:T(1,128)}', space=vmem, size = 0x9000, scoped, tag = 'internal scratch']
  %s0 = inlined_call_operand.hbm [shape: f32[4,256], index: 0, kind: input, shape index: {}]
  %s1 = inlined_call_operand.hbm [shape: f32[4,2,256], index: 1, kind: input, shape index: {}]
  %s2 = inlined_call_operand.hbm [shape: f32[2,256], index: 2, kind: output, shape index: {}]
  %s3 = sld [smem:[#allocation0]]
  $region26: #{tpu_custom_call.1} parent=0
    _
  %s5 = ssub.s32 1, %s3
  %s6 = scalar_select 0, %s5, %s3
  $region1: #{tpu_custom_call.1} parent=0
    #allocation2 [shape = 'u8[4096]{0}', space=vmem, size = 0x1000, scoped, tag = 'input window, operand 0, single buffered']
    #allocation3 [shape = 's32[1]{0}', space=sflag, size = 0x4, scoped, tag = 'scoped memory for tpu_custom_call.1']
    #allocation4 [shape = 's32[1]{0}', space=sflag, size = 0x4, scoped, tag = 'scoped memory for tpu_custom_call.1']
    #allocation5 [shape = 'u8[8192]{0}', space=vmem, size = 0x2000, scoped, tag = 'input window, operand 1, single buffered']
    #allocation6 [shape = 's32[1]{0}', space=sflag, size = 0x4, scoped, tag = 'scoped memory for tpu_custom_call.1']
    #allocation7 [shape = 'u8[2048]{0}', space=vmem, size = 0x800, scoped, tag = 'output window, operand 0, single buffered']
    %7 = vsyncpa [#allocation3], 0
    %8 = vsyncpa [#allocation6], 0
    %9 = vsyncpa [#allocation4], 0
    // Predicated region
    $region2: #{tpu_custom_call.1} parent=1 // pred_check
      _
    $region3: #{tpu_custom_call.1} parent=1 // pred_check_branch
      %11 = sbr.rel (0) target = $region5
    $region4: #{tpu_custom_call.1} parent=1 // pred_region
      %13 = vsyncadd [#allocation3], 0
      %s15 = sshll.u32 %s0, 4
      %s16 = int_to_ptr.hbm [resolvable:$true] %s15
      %s17 = sshll.u32 [#allocation2], 4
      %s18 = int_to_ptr.vmem [resolvable:$true] %s17
      %20 = dma.hbm_to_vmem [thread:$0]  %s16, 128, %s18, [#allocation3]
    $region5: #{tpu_custom_call.1} parent=1 // pred_fallthru
      _
    // Predicated region
    $region6: #{tpu_custom_call.1} parent=1 // pred_check
      _
    $region7: #{tpu_custom_call.1} parent=1 // pred_check_branch
      %22 = sbr.rel (0) target = $region9
    $region8: #{tpu_custom_call.1} parent=1 // pred_region
      %24 = vsyncadd [#allocation6], 0
      %s25 = sshll.u32 %s1, 4
      %s26 = int_to_ptr.hbm [resolvable:$true] %s25
      %s27 = sshll.u32 [#allocation5], 4
      %s28 = int_to_ptr.vmem [resolvable:$true] %s27
      %33 = dma.hbm_to_vmem [thread:$0]  %s26, 256, %s28, [#allocation6], 64, 64, 4
    $region9: #{tpu_custom_call.1} parent=1 // pred_fallthru
      _
    // Predicated region
    $region10: #{tpu_custom_call.1} parent=1 // pred_check
      _
    $region11: #{tpu_custom_call.1} parent=1 // pred_check_branch
      %35 = sbr.rel (0) target = $region13
    $region12: #{tpu_custom_call.1} parent=1 // pred_region
      %37 = dma.done [#allocation3], 128
    $region13: #{tpu_custom_call.1} parent=1 // pred_fallthru
      _
    // Predicated region
    $region14: #{tpu_custom_call.1} parent=1 // pred_check
      _
    $region15: #{tpu_custom_call.1} parent=1 // pred_check_branch
      %39 = sbr.rel (0) target = $region17
    $region16: #{tpu_custom_call.1} parent=1 // pred_region
      %41 = dma.done [#allocation6], 256
    $region17: #{tpu_custom_call.1} parent=1 // pred_fallthru
      _
    %v42 = vld [vmem:[#allocation5] sm:$0xf]
    %v43 = vld [vmem:[#allocation2] ss:$4 sm:$0x3]
    %v45 = vperm.slane %v43, 0
    %v46 = vperm.slane %v43, 1
    %v47 = vrot.slane %v46, 6
    %vm48 = vcmask 1041408
    %v49 = vsel %vm48, %v45, %v47
    %v51 = vmul.f32 %v42, %v49
    %s52 = scalar_lea.vmem [#allocation5], 4
    %v53 = vld [vmem:[%s52] sm:$0xf]
    %s54 = scalar_lea.vmem [#allocation2], 1
    %v55 = vld [vmem:[%s54] ss:$4 sm:$0x3]
    %v57 = vperm.slane %v55, 0
    %v58 = vperm.slane %v55, 1
    %v59 = vrot.slane %v58, 6
    %v60 = vsel %vm48, %v57, %v59
    %v62 = vmul.f32 %v53, %v60
    %v63 = vadd.f32 %v51, %v62
    %s64 = scalar_lea.vmem [#allocation5], 8
    %v65 = vld [vmem:[%s64] sm:$0xf]
    %s66 = scalar_lea.vmem [#allocation2], 2
    %v67 = vld [vmem:[%s66] ss:$4 sm:$0x3]
    %v69 = vperm.slane %v67, 0
    %v70 = vperm.slane %v67, 1
    %v71 = vrot.slane %v70, 6
    %v72 = vsel %vm48, %v69, %v71
    %v74 = vmul.f32 %v65, %v72
    %v75 = vadd.f32 %v63, %v74
    %s76 = scalar_lea.vmem [#allocation5], 12
    %v77 = vld [vmem:[%s76] sm:$0xf]
    %s78 = scalar_lea.vmem [#allocation2], 3
    %v79 = vld [vmem:[%s78] ss:$4 sm:$0x3]
    %v81 = vperm.slane %v79, 0
    %v82 = vperm.slane %v79, 1
    %v83 = vrot.slane %v82, 6
    %v84 = vsel %vm48, %v81, %v83
    %v86 = vmul.f32 %v77, %v84
    %v87 = vadd.f32 %v75, %v86
    %88 = vst [vmem:[#allocation7] sm:$0xf] %v87
    // Predicated region
    $region18: #{tpu_custom_call.1} parent=1 // pred_check
      _
    $region19: #{tpu_custom_call.1} parent=1 // pred_check_branch
      %90 = sbr.rel (0) target = $region21
    $region20: #{tpu_custom_call.1} parent=1 // pred_region
      %92 = vsyncadd [#allocation4], 0
      %s94 = sshll.u32 [#allocation7], 4
      %s95 = int_to_ptr.vmem [resolvable:$true] %s94
      %s96 = sshll.u32 %s2, 4
      %s97 = int_to_ptr.hbm [resolvable:$true] %s96
      %99 = dma.vmem_to_hbm [thread:$0]  %s95, 64, %s97, [#allocation4]
    $region21: #{tpu_custom_call.1} parent=1 // pred_fallthru
      _
    // Predicated region
    $region22: #{tpu_custom_call.1} parent=1 // pred_check
      _
    $region23: #{tpu_custom_call.1} parent=1 // pred_check_branch
      %101 = sbr.rel (0) target = $region25
    $region24: #{tpu_custom_call.1} parent=1 // pred_region
      %103 = dma.done [#allocation4], 64
    $region25: #{tpu_custom_call.1} parent=1 // pred_fallthru
      _
    %104 = vsyncpa [#allocation3], 1
    %105 = vsyncpa [#allocation6], 1
    %106 = vsyncpa [#allocation4], 1

</llo_original>
